<compile_context>
chip_gen: v7x
topology: tpu7x:2x2x1
jax: 0.10.0
libtpu: 0.0.40
codegen_flags: <defaults>
</compile_context>

<pallas_src>
import functools

import jax
import jax.numpy as jnp
from jax.experimental import pallas as pl
from jax.experimental.pallas import tpu as pltpu


def _round_up(n, m):
    return ((n + m - 1) // m) * m


def _pad_to(a, shape):
    pads = [(0, s - d) for d, s in zip(a.shape, shape)]
    return jnp.pad(a, pads)


# ----------------------------------------------------------------------------
# Fused kernel:  x -> (mean, logvar, x_hat)
# ----------------------------------------------------------------------------
def vae_kernel(x_ref, wh_ref, bh_ref, wmv_ref, bmv_ref,
               wd_ref, bd_ref, wo_ref, bo_ref, eps_ref,
               mean_ref, var_ref, xhat_ref):
    zp = mean_ref.shape[-1]

    # ---- encoder: hidden layer ----
    x = x_ref[...].astype(jnp.bfloat16)
    h = jnp.dot(x, wh_ref[...], preferred_element_type=jnp.float32) + bh_ref[...]
    h = jnp.maximum(h, 0.0)                                      # ReLU (f32)

    # ---- merged mean/logvar heads: one [H, 2*Zp] matmul ----
    mv = jnp.dot(h.astype(jnp.bfloat16), wmv_ref[...],
                 preferred_element_type=jnp.float32) + bmv_ref[...]
    mean = mv[:, :zp]
    logvar = mv[:, zp:]
    mean_ref[...] = mean
    var_ref[...] = logvar

    # ---- reparameterization: z = mean + exp(0.5*logvar) * eps ----
    z = mean + jnp.exp(0.5 * logvar) * eps_ref[...]

    # ---- decoder ----
    h2 = jnp.dot(z.astype(jnp.bfloat16), wd_ref[...],
                 preferred_element_type=jnp.float32) + bd_ref[...]
    h2 = jnp.maximum(h2, 0.0)                                    # ReLU (f32)
    xhat_ref[...] = (jnp.dot(h2.astype(jnp.bfloat16), wo_ref[...],
                             preferred_element_type=jnp.float32) + bo_ref[...])


# ----------------------------------------------------------------------------
# Parameter init (raw, PyTorch-like) and packing (padded + bf16 for MXU)
# ----------------------------------------------------------------------------
def init_params(key, d_in, hidden, latent, d_out):
    ks = jax.random.split(key, 5)
    scale = 0.02
    return {
        "w_h":    scale * jax.random.normal(ks[0], (d_in, hidden), jnp.float32),
        "b_h":    jnp.zeros((1, hidden), jnp.float32),
        "w_mean": scale * jax.random.normal(ks[1], (hidden, latent), jnp.float32),
        "b_mean": jnp.zeros((1, latent), jnp.float32),
        "w_var":  scale * jax.random.normal(ks[2], (hidden, latent), jnp.float32),
        "b_var":  jnp.zeros((1, latent), jnp.float32),
        "w_dec":  scale * jax.random.normal(ks[3], (latent, hidden), jnp.float32),
        "b_dec":  jnp.zeros((1, hidden), jnp.float32),
        "w_out":  scale * jax.random.normal(ks[4], (hidden, d_out), jnp.float32),
        "b_out":  jnp.zeros((1, d_out), jnp.float32),
    }


def pack_params(p, d_in, hidden, latent, d_out):
    dp = _round_up(d_in, 128)
    hp = _round_up(hidden, 128)
    zp = _round_up(latent, 128)
    op = _round_up(d_out, 128)
    packed = {
        "w_h":  _pad_to(p["w_h"], (dp, hp)).astype(jnp.bfloat16),
        "b_h":  _pad_to(p["b_h"], (1, hp)),
        # merged mean|var head: [hp, 2*zp]  (zero-padded columns stay zero)
        "w_mv": jnp.concatenate([_pad_to(p["w_mean"], (hp, zp)),
                                 _pad_to(p["w_var"], (hp, zp))],
                                axis=1).astype(jnp.bfloat16),
        "b_mv": jnp.concatenate([_pad_to(p["b_mean"], (1, zp)),
                                 _pad_to(p["b_var"], (1, zp))], axis=1),
        "w_dec": _pad_to(p["w_dec"], (zp, hp)).astype(jnp.bfloat16),
        "b_dec": _pad_to(p["b_dec"], (1, hp)),
        "w_out": _pad_to(p["w_out"], (hp, op)).astype(jnp.bfloat16),
        "b_out": _pad_to(p["b_out"], (1, op)),
    }
    dims = dict(D=d_in, H=hidden, Z=latent, O=d_out, DP=dp, HP=hp, ZP=zp, OP=op)
    return packed, dims


# ----------------------------------------------------------------------------
# Wrapper: pad batch / lanes, single fused pallas_call, slice back
# ----------------------------------------------------------------------------
@functools.partial(jax.jit, static_argnames=("dims_key",))
def _vae_forward_impl(x, eps, pp, dims_key):
    dims = dict(dims_key)
    B = x.shape[0]
    TB = 128 if B >= 128 else _round_up(B, 8)
    Bp = _round_up(B, TB)

    xp = _pad_to(x, (Bp, dims["DP"]))
    epsp = _pad_to(eps, (Bp, dims["ZP"]))

    def row_spec(width):
        return pl.BlockSpec((TB, width), lambda i: (i, 0))

    def const_spec(arr):
        return pl.BlockSpec(arr.shape, lambda i: (0, 0))

    grid = (Bp // TB,)
    mean_p, var_p, xhat_p = pl.pallas_call(
        vae_kernel,
        grid=grid,
        out_shape=(jax.ShapeDtypeStruct((Bp, dims["ZP"]), jnp.float32),
                   jax.ShapeDtypeStruct((Bp, dims["ZP"]), jnp.float32),
                   jax.ShapeDtypeStruct((Bp, dims["OP"]), jnp.float32)),
        in_specs=[
            row_spec(dims["DP"]),            # x
            const_spec(pp["w_h"]),  const_spec(pp["b_h"]),
            const_spec(pp["w_mv"]), const_spec(pp["b_mv"]),
            const_spec(pp["w_dec"]), const_spec(pp["b_dec"]),
            const_spec(pp["w_out"]), const_spec(pp["b_out"]),
            row_spec(dims["ZP"]),            # eps
        ],
        out_specs=(row_spec(dims["ZP"]),
                   row_spec(dims["ZP"]),
                   row_spec(dims["OP"])),
        compiler_params=pltpu.CompilerParams(
            dimension_semantics=("parallel",),
            vmem_limit_bytes=32 * 1024 * 1024,   # safe on v7x's 64 MiB VMEM
        ),
    )(xp, pp["w_h"], pp["b_h"], pp["w_mv"], pp["b_mv"],
      pp["w_dec"], pp["b_dec"], pp["w_out"], pp["b_out"], epsp)

    mean = mean_p[:B, :dims["Z"]]
    var = var_p[:B, :dims["Z"]]
    x_hat = xhat_p[:B, :dims["O"]]
    return x_hat, mean, var


def vae_forward(x, eps, packed_params, dims):
    """Fused Pallas VAE forward. Returns (x_hat, mean, var[=logvar])."""
    return _vae_forward_impl(x, eps, packed_params, tuple(sorted(dims.items())))


# ----------------------------------------------------------------------------
if __name__ == "__main__":
    # Small shapes consistent with the prompt-generator VAE:
    # length=5, embed_dim=32  ->  decoder output dim = 160
    B, D_IN, HIDDEN, LATENT = 2, 32, 64, 16
    LENGTH, EMBED_DIM = 5, 32
    D_OUT = LENGTH * EMBED_DIM

    key = jax.random.PRNGKey(0)
    k_x, k_eps, k_p = jax.random.split(key, 3)

    x = jax.random.normal(k_x, (B, D_IN), jnp.float32)
    # TODO(synk): eps is passed in (could instead be drawn in-kernel with
    # pltpu.prng_random_bits); torch.randn_like bitwise parity is impossible.
    eps = jax.random.normal(k_eps, (B, LATENT), jnp.float32)

    raw = init_params(k_p, D_IN, HIDDEN, LATENT, D_OUT)
    packed, dims = pack_params(raw, D_IN, HIDDEN, LATENT, D_OUT)

    x_hat, mean, var = vae_forward(x, eps, packed, dims)
    jax.block_until_ready((x_hat, mean, var))

    # Reference check in plain f32 JAX (kernel uses bf16 matmul inputs, so
    # compare with a tolerance appropriate to bf16).
    h = jnp.maximum(x @ raw["w_h"] + raw["b_h"], 0.0)
    mean_ref = h @ raw["w_mean"] + raw["b_mean"]
    var_ref = h @ raw["w_var"] + raw["b_var"]
    z_ref = mean_ref + jnp.exp(0.5 * var_ref) * eps
    h2 = jnp.maximum(z_ref @ raw["w_dec"] + raw["b_dec"], 0.0)
    x_hat_ref = h2 @ raw["w_out"] + raw["b_out"]

    assert mean.shape == (B, LATENT) and var.shape == (B, LATENT)
    assert x_hat.shape == (B, D_OUT)
    assert jnp.allclose(mean, mean_ref, atol=5e-3, rtol=5e-2), \
        float(jnp.max(jnp.abs(mean - mean_ref)))
    assert jnp.allclose(var, var_ref, atol=5e-3, rtol=5e-2), \
        float(jnp.max(jnp.abs(var - var_ref)))
    assert jnp.allclose(x_hat, x_hat_ref, atol=5e-3, rtol=5e-2), \
        float(jnp.max(jnp.abs(x_hat - x_hat_ref)))

    print("KERNEL_OK")
</pallas_src>

<mosaic_0001>
module attributes {stable_mosaic.version = 11 : i64} {
  func.func @vae_kernel(%arg0: i32, %arg1: memref<8x128xf32, #tpu.memory_space<vmem>>, %arg2: memref<128x128xbf16, #tpu.memory_space<vmem>>, %arg3: memref<1x128xf32, #tpu.memory_space<vmem>>, %arg4: memref<128x256xbf16, #tpu.memory_space<vmem>>, %arg5: memref<1x256xf32, #tpu.memory_space<vmem>>, %arg6: memref<128x128xbf16, #tpu.memory_space<vmem>>, %arg7: memref<1x128xf32, #tpu.memory_space<vmem>>, %arg8: memref<128x256xbf16, #tpu.memory_space<vmem>>, %arg9: memref<1x256xf32, #tpu.memory_space<vmem>>, %arg10: memref<8x128xf32, #tpu.memory_space<vmem>>, %arg11: memref<8x128xf32, #tpu.memory_space<vmem>>, %arg12: memref<8x128xf32, #tpu.memory_space<vmem>>, %arg13: memref<8x256xf32, #tpu.memory_space<vmem>>) attributes {dimension_semantics = [#tpu.dimension_semantics<parallel>], iteration_bounds = array<i64: 1>, scalar_prefetch = 0 : i64, scratch_operands = 0 : i64, tpu.core_type = #tpu.core_type<tc>, window_params = [{transform_indices = @transform_0, window_bounds = array<i64: 8, 128>}, {pipeline_mode = #tpu.pipeline_mode<synchronous>, transform_indices = @transform_1, window_bounds = array<i64: 128, 128>}, {pipeline_mode = #tpu.pipeline_mode<synchronous>, transform_indices = @transform_2, window_bounds = array<i64: 1, 128>}, {pipeline_mode = #tpu.pipeline_mode<synchronous>, transform_indices = @transform_3, window_bounds = array<i64: 128, 256>}, {pipeline_mode = #tpu.pipeline_mode<synchronous>, transform_indices = @transform_4, window_bounds = array<i64: 1, 256>}, {pipeline_mode = #tpu.pipeline_mode<synchronous>, transform_indices = @transform_5, window_bounds = array<i64: 128, 128>}, {pipeline_mode = #tpu.pipeline_mode<synchronous>, transform_indices = @transform_6, window_bounds = array<i64: 1, 128>}, {pipeline_mode = #tpu.pipeline_mode<synchronous>, transform_indices = @transform_7, window_bounds = array<i64: 128, 256>}, {pipeline_mode = #tpu.pipeline_mode<synchronous>, transform_indices = @transform_8, window_bounds = array<i64: 1, 256>}, {transform_indices = @transform_9, window_bounds = array<i64: 8, 128>}, {transform_indices = @transform_10, window_bounds = array<i64: 8, 128>}, {transform_indices = @transform_11, window_bounds = array<i64: 8, 128>}, {transform_indices = @transform_12, window_bounds = array<i64: 8, 256>}]} {
    %c0 = arith.constant 0 : index
    %c0_0 = arith.constant 0 : index
    %0 = vector.load %arg1[%c0, %c0_0] : memref<8x128xf32, #tpu.memory_space<vmem>>, vector<8x128xf32>
    %1 = arith.truncf %0 : vector<8x128xf32> to vector<8x128xbf16>
    %c0_1 = arith.constant 0 : index
    %c0_2 = arith.constant 0 : index
    %2 = vector.load %arg2[%c0_1, %c0_2] : memref<128x128xbf16, #tpu.memory_space<vmem>>, vector<128x128xbf16>
    %cst = arith.constant dense<0.000000e+00> : vector<8x128xf32>
    %3 = tpu.matmul %1, %2, %cst {dimension_numbers = #tpu.dot_dimension_numbers<[1], [0], [0], [1], [0, 0, 1, 1], [], []>} : vector<8x128xbf16>, vector<128x128xbf16>, vector<8x128xf32> -> vector<8x128xf32>
    %c0_3 = arith.constant 0 : index
    %c0_4 = arith.constant 0 : index
    %4 = vector.load %arg3[%c0_3, %c0_4] : memref<1x128xf32, #tpu.memory_space<vmem>>, vector<1x128xf32>
    %5 = vector.broadcast %4 : vector<1x128xf32> to vector<8x128xf32>
    %6 = arith.addf %3, %5 : vector<8x128xf32>
    %cst_5 = arith.constant 0.000000e+00 : f32
    %7 = vector.broadcast %cst_5 : f32 to vector<8x128xf32>
    %8 = arith.maximumf %6, %7 : vector<8x128xf32>
    %9 = arith.truncf %8 : vector<8x128xf32> to vector<8x128xbf16>
    %c0_6 = arith.constant 0 : index
    %c0_7 = arith.constant 0 : index
    %10 = vector.load %arg4[%c0_6, %c0_7] : memref<128x256xbf16, #tpu.memory_space<vmem>>, vector<128x256xbf16>
    %cst_8 = arith.constant dense<0.000000e+00> : vector<8x256xf32>
    %11 = tpu.matmul %9, %10, %cst_8 {dimension_numbers = #tpu.dot_dimension_numbers<[1], [0], [0], [1], [0, 0, 1, 1], [], []>} : vector<8x128xbf16>, vector<128x256xbf16>, vector<8x256xf32> -> vector<8x256xf32>
    %c0_9 = arith.constant 0 : index
    %c0_10 = arith.constant 0 : index
    %12 = vector.load %arg5[%c0_9, %c0_10] : memref<1x256xf32, #tpu.memory_space<vmem>>, vector<1x256xf32>
    %13 = vector.broadcast %12 : vector<1x256xf32> to vector<8x256xf32>
    %14 = arith.addf %11, %13 : vector<8x256xf32>
    %15 = vector.extract_strided_slice %14 {offsets = [0, 0], sizes = [8, 128], strides = [1, 1]} : vector<8x256xf32> to vector<8x128xf32>
    %16 = vector.extract_strided_slice %14 {offsets = [0, 128], sizes = [8, 128], strides = [1, 1]} : vector<8x256xf32> to vector<8x128xf32>
    %c0_11 = arith.constant 0 : index
    %c0_12 = arith.constant 0 : index
    %17 = vector.load %arg11[%c0_11, %c0_12] : memref<8x128xf32, #tpu.memory_space<vmem>>, vector<8x128xf32>
    tpu.vector_store %arg11[%c0_11, %c0_12], %15 {strides = array<i32>} : memref<8x128xf32, #tpu.memory_space<vmem>>, vector<8x128xf32>,
    %c0_13 = arith.constant 0 : index
    %c0_14 = arith.constant 0 : index
    %18 = vector.load %arg12[%c0_13, %c0_14] : memref<8x128xf32, #tpu.memory_space<vmem>>, vector<8x128xf32>
    tpu.vector_store %arg12[%c0_13, %c0_14], %16 {strides = array<i32>} : memref<8x128xf32, #tpu.memory_space<vmem>>, vector<8x128xf32>,
    %cst_15 = arith.constant 5.000000e-01 : f32
    %19 = vector.broadcast %cst_15 : f32 to vector<8x128xf32>
    %20 = arith.mulf %19, %16 : vector<8x128xf32>
    %21 = math.exp %20 : vector<8x128xf32>
    %c0_16 = arith.constant 0 : index
    %c0_17 = arith.constant 0 : index
    %22 = vector.load %arg10[%c0_16, %c0_17] : memref<8x128xf32, #tpu.memory_space<vmem>>, vector<8x128xf32>
    %23 = arith.mulf %21, %22 : vector<8x128xf32>
    %24 = arith.addf %15, %23 : vector<8x128xf32>
    %25 = arith.truncf %24 : vector<8x128xf32> to vector<8x128xbf16>
    %c0_18 = arith.constant 0 : index
    %c0_19 = arith.constant 0 : index
    %26 = vector.load %arg6[%c0_18, %c0_19] : memref<128x128xbf16, #tpu.memory_space<vmem>>, vector<128x128xbf16>
    %cst_20 = arith.constant dense<0.000000e+00> : vector<8x128xf32>
    %27 = tpu.matmul %25, %26, %cst_20 {dimension_numbers = #tpu.dot_dimension_numbers<[1], [0], [0], [1], [0, 0, 1, 1], [], []>} : vector<8x128xbf16>, vector<128x128xbf16>, vector<8x128xf32> -> vector<8x128xf32>
    %c0_21 = arith.constant 0 : index
    %c0_22 = arith.constant 0 : index
    %28 = vector.load %arg7[%c0_21, %c0_22] : memref<1x128xf32, #tpu.memory_space<vmem>>, vector<1x128xf32>
    %29 = vector.broadcast %28 : vector<1x128xf32> to vector<8x128xf32>
    %30 = arith.addf %27, %29 : vector<8x128xf32>
    %cst_23 = arith.constant 0.000000e+00 : f32
    %31 = vector.broadcast %cst_23 : f32 to vector<8x128xf32>
    %32 = arith.maximumf %30, %31 : vector<8x128xf32>
    %33 = arith.truncf %32 : vector<8x128xf32> to vector<8x128xbf16>
    %c0_24 = arith.constant 0 : index
    %c0_25 = arith.constant 0 : index
    %34 = vector.load %arg8[%c0_24, %c0_25] : memref<128x256xbf16, #tpu.memory_space<vmem>>, vector<128x256xbf16>
    %cst_26 = arith.constant dense<0.000000e+00> : vector<8x256xf32>
    %35 = tpu.matmul %33, %34, %cst_26 {dimension_numbers = #tpu.dot_dimension_numbers<[1], [0], [0], [1], [0, 0, 1, 1], [], []>} : vector<8x128xbf16>, vector<128x256xbf16>, vector<8x256xf32> -> vector<8x256xf32>
    %c0_27 = arith.constant 0 : index
    %c0_28 = arith.constant 0 : index
    %36 = vector.load %arg9[%c0_27, %c0_28] : memref<1x256xf32, #tpu.memory_space<vmem>>, vector<1x256xf32>
    %37 = vector.broadcast %36 : vector<1x256xf32> to vector<8x256xf32>
    %38 = arith.addf %35, %37 : vector<8x256xf32>
    %c0_29 = arith.constant 0 : index
    %c0_30 = arith.constant 0 : index
    %39 = vector.load %arg13[%c0_29, %c0_30] : memref<8x256xf32, #tpu.memory_space<vmem>>, vector<8x256xf32>
    tpu.vector_store %arg13[%c0_29, %c0_30], %38 {strides = array<i32>} : memref<8x256xf32, #tpu.memory_space<vmem>>, vector<8x256xf32>,
    return
  }
  func.func @transform_0(%arg0: i32) -> (i32, i32) {
    %c0_i32 = arith.constant 0 : i32
    %c0_i32_0 = arith.constant 0 : i32
    return %arg0, %c0_i32 : i32, i32
  }
  func.func @transform_1(%arg0: i32) -> (i32, i32) {
    %c0_i32 = arith.constant 0 : i32
    %c0_i32_0 = arith.constant 0 : i32
    %c0_i32_1 = arith.constant 0 : i32
    return %c0_i32, %c0_i32_0 : i32, i32
  }
  func.func @transform_2(%arg0: i32) -> (i32, i32) {
    %c0_i32 = arith.constant 0 : i32
    %c0_i32_0 = arith.constant 0 : i32
    %c0_i32_1 = arith.constant 0 : i32
    return %c0_i32, %c0_i32_0 : i32, i32
  }
  func.func @transform_3(%arg0: i32) -> (i32, i32) {
    %c0_i32 = arith.constant 0 : i32
    %c0_i32_0 = arith.constant 0 : i32
    %c0_i32_1 = arith.constant 0 : i32
    return %c0_i32, %c0_i32_0 : i32, i32
  }
  func.func @transform_4(%arg0: i32) -> (i32, i32) {
    %c0_i32 = arith.constant 0 : i32
    %c0_i32_0 = arith.constant 0 : i32
    %c0_i32_1 = arith.constant 0 : i32
    return %c0_i32, %c0_i32_0 : i32, i32
  }
  func.func @transform_5(%arg0: i32) -> (i32, i32) {
    %c0_i32 = arith.constant 0 : i32
    %c0_i32_0 = arith.constant 0 : i32
    %c0_i32_1 = arith.constant 0 : i32
    return %c0_i32, %c0_i32_0 : i32, i32
  }
  func.func @transform_6(%arg0: i32) -> (i32, i32) {
    %c0_i32 = arith.constant 0 : i32
    %c0_i32_0 = arith.constant 0 : i32
    %c0_i32_1 = arith.constant 0 : i32
    return %c0_i32, %c0_i32_0 : i32, i32
  }
  func.func @transform_7(%arg0: i32) -> (i32, i32) {
    %c0_i32 = arith.constant 0 : i32
    %c0_i32_0 = arith.constant 0 : i32
    %c0_i32_1 = arith.constant 0 : i32
    return %c0_i32, %c0_i32_0 : i32, i32
  }
  func.func @transform_8(%arg0: i32) -> (i32, i32) {
    %c0_i32 = arith.constant 0 : i32
    %c0_i32_0 = arith.constant 0 : i32
    %c0_i32_1 = arith.constant 0 : i32
    return %c0_i32, %c0_i32_0 : i32, i32
  }
  func.func @transform_9(%arg0: i32) -> (i32, i32) {
    %c0_i32 = arith.constant 0 : i32
    %c0_i32_0 = arith.constant 0 : i32
    return %arg0, %c0_i32 : i32, i32
  }
  func.func @transform_10(%arg0: i32) -> (i32, i32) {
    %c0_i32 = arith.constant 0 : i32
    %c0_i32_0 = arith.constant 0 : i32
    return %arg0, %c0_i32 : i32, i32
  }
  func.func @transform_11(%arg0: i32) -> (i32, i32) {
    %c0_i32 = arith.constant 0 : i32
    %c0_i32_0 = arith.constant 0 : i32
    return %arg0, %c0_i32 : i32, i32
  }
  func.func @transform_12(%arg0: i32) -> (i32, i32) {
    %c0_i32 = arith.constant 0 : i32
    %c0_i32_0 = arith.constant 0 : i32
    return %arg0, %c0_i32 : i32, i32
  }
}

</mosaic_0001>

<llo_original>
// kernel: _vae_forward_impl.1
$region0: #{_vae_forward_impl.1}
  #allocation0 [shape = 'u32[]', space=smem, size = 0x4, offset = 0x4, fixed_abs, tag = 'smem constant byte address 0x4 - core index']
  #allocation1 [shape = 'u32[144,128]{1,0:T(1,128)}', space=vmem, size = 0x12000, scoped, tag = 'internal scratch']
  %s0 = inlined_call_operand.vmem [shape: f32[8,128], index: 0, kind: input, shape index: {}]
  %s1 = inlined_call_operand.hbm [shape: bf16[128,128], index: 1, kind: input, shape index: {}]
  %s2 = inlined_call_operand.vmem [shape: f32[1,128], index: 2, kind: input, shape index: {}]
  %s3 = inlined_call_operand.hbm [shape: bf16[128,256], index: 3, kind: input, shape index: {}]
  %s4 = inlined_call_operand.vmem [shape: f32[1,256], index: 4, kind: input, shape index: {}]
  %s5 = inlined_call_operand.hbm [shape: bf16[128,128], index: 5, kind: input, shape index: {}]
  %s6 = inlined_call_operand.vmem [shape: f32[1,128], index: 6, kind: input, shape index: {}]
  %s7 = inlined_call_operand.hbm [shape: bf16[128,256], index: 7, kind: input, shape index: {}]
  %s8 = inlined_call_operand.vmem [shape: f32[1,256], index: 8, kind: input, shape index: {}]
  %s9 = inlined_call_operand.vmem [shape: f32[8,128], index: 9, kind: input, shape index: {}]
  %s10 = inlined_call_operand.vmem [shape: f32[8,128], index: 10, kind: output, shape index: {0}]
  %s11 = inlined_call_operand.vmem [shape: f32[8,128], index: 11, kind: output, shape index: {1}]
  %s12 = inlined_call_operand.vmem [shape: f32[8,256], index: 12, kind: output, shape index: {2}]
  %13 = xla_tuple %s10, %s11, %s12
  %s14 = sld [smem:[#allocation0]]
  $region82: #{_vae_forward_impl.1} parent=0
    _
  %s16 = ssub.s32 1, %s14
  %s17 = scalar_select 0, %s16, %s14
  $region1: #{_vae_forward_impl.1} parent=0
    #allocation2 [shape = 'u8[32768]{0}', space=vmem, size = 0x8000, scoped, tag = 'input window, operand 1, single buffered']
    #allocation3 [shape = 's32[1]{0}', space=sflag, size = 0x4, scoped, tag = 'scoped memory for _vae_forward_impl.1']
    #allocation4 [shape = 'u8[65536]{0}', space=vmem, size = 0x10000, scoped, tag = 'input window, operand 3, single buffered']
    #allocation5 [shape = 's32[1]{0}', space=sflag, size = 0x4, scoped, tag = 'scoped memory for _vae_forward_impl.1']
    #allocation6 [shape = 'u8[32768]{0}', space=vmem, size = 0x8000, scoped, tag = 'input window, operand 5, single buffered']
    #allocation7 [shape = 'u8[65536]{0}', space=vmem, size = 0x10000, scoped, tag = 'input window, operand 7, single buffered']
    #allocation8 [shape = 's32[1]{0}', space=sflag, size = 0x4, scoped, tag = 'scoped memory for _vae_forward_impl.1']
    %18 = vsyncpa [#allocation3], 0
    %19 = vsyncpa [#allocation5], 0
    %20 = vsyncpa [#allocation8], 0
    // Predicated region
    $region2: #{_vae_forward_impl.1} parent=1 // pred_check
      _
    $region3: #{_vae_forward_impl.1} parent=1 // pred_check_branch
      %22 = sbr.rel (0) target = $region5
    $region4: #{_vae_forward_impl.1} parent=1 // pred_region
      _
    $region5: #{_vae_forward_impl.1} parent=1 // pred_fallthru
      _
    // Predicated region
    $region6: #{_vae_forward_impl.1} parent=1 // pred_check
      _
    $region7: #{_vae_forward_impl.1} parent=1 // pred_check_branch
      %24 = sbr.rel (0) target = $region9
    $region8: #{_vae_forward_impl.1} parent=1 // pred_region
      %s26 = ssub.s32 1024, 1024
      %27 = vsyncadd [#allocation3], %s26
      %s28 = sshll.u32 [#allocation2], 4
      %s29 = int_to_ptr.vmem [resolvable:$true] %s28
      %34 = dma.hbm_to_vmem [thread:$0]  %s1, 1024, %s29, [#allocation3], 64, 64, 4
    $region9: #{_vae_forward_impl.1} parent=1 // pred_fallthru
      _
    // Predicated region
    $region10: #{_vae_forward_impl.1} parent=1 // pred_check
      _
    $region11: #{_vae_forward_impl.1} parent=1 // pred_check_branch
      %36 = sbr.rel (0) target = $region13
    $region12: #{_vae_forward_impl.1} parent=1 // pred_region
      _
    $region13: #{_vae_forward_impl.1} parent=1 // pred_fallthru
      _
    // Predicated region
    $region14: #{_vae_forward_impl.1} parent=1 // pred_check
      _
    $region15: #{_vae_forward_impl.1} parent=1 // pred_check_branch
      %38 = sbr.rel (0) target = $region17
    $region16: #{_vae_forward_impl.1} parent=1 // pred_region
      %s40 = ssub.s32 2048, 2048
      %41 = vsyncadd [#allocation5], %s40
      %s42 = sshll.u32 [#allocation4], 4
      %s43 = int_to_ptr.vmem [resolvable:$true] %s42
      %48 = dma.hbm_to_vmem [thread:$0]  %s3, 2048, %s43, [#allocation5], 128, 128, 8
    $region17: #{_vae_forward_impl.1} parent=1 // pred_fallthru
      _
    // Predicated region
    $region18: #{_vae_forward_impl.1} parent=1 // pred_check
      _
    $region19: #{_vae_forward_impl.1} parent=1 // pred_check_branch
      %50 = sbr.rel (0) target = $region21
    $region20: #{_vae_forward_impl.1} parent=1 // pred_region
      _
    $region21: #{_vae_forward_impl.1} parent=1 // pred_fallthru
      _
    // Predicated region
    $region22: #{_vae_forward_impl.1} parent=1 // pred_check
      _
    $region23: #{_vae_forward_impl.1} parent=1 // pred_check_branch
      %52 = sbr.rel (0) target = $region25
    $region24: #{_vae_forward_impl.1} parent=1 // pred_region
      %s54 = ssub.s32 1024, 1024
      %55 = vsyncadd [#allocation5], %s54
      %s56 = sshll.u32 [#allocation6], 4
      %s57 = int_to_ptr.vmem [resolvable:$true] %s56
      %62 = dma.hbm_to_vmem [thread:$0]  %s5, 1024, %s57, [#allocation5], 64, 64, 4
    $region25: #{_vae_forward_impl.1} parent=1 // pred_fallthru
      _
    // Predicated region
    $region26: #{_vae_forward_impl.1} parent=1 // pred_check
      _
    $region27: #{_vae_forward_impl.1} parent=1 // pred_check_branch
      %64 = sbr.rel (0) target = $region29
    $region28: #{_vae_forward_impl.1} parent=1 // pred_region
      _
    $region29: #{_vae_forward_impl.1} parent=1 // pred_fallthru
      _
    // Predicated region
    $region30: #{_vae_forward_impl.1} parent=1 // pred_check
      _
    $region31: #{_vae_forward_impl.1} parent=1 // pred_check_branch
      %66 = sbr.rel (0) target = $region33
    $region32: #{_vae_forward_impl.1} parent=1 // pred_region
      %s68 = ssub.s32 2048, 2048
      %69 = vsyncadd [#allocation8], %s68
      %s70 = sshll.u32 [#allocation7], 4
      %s71 = int_to_ptr.vmem [resolvable:$true] %s70
      %76 = dma.hbm_to_vmem [thread:$0]  %s7, 2048, %s71, [#allocation8], 128, 128, 8
    $region33: #{_vae_forward_impl.1} parent=1 // pred_fallthru
      _
    // Predicated region
    $region34: #{_vae_forward_impl.1} parent=1 // pred_check
      _
    $region35: #{_vae_forward_impl.1} parent=1 // pred_check_branch
      %78 = sbr.rel (0) target = $region37
    $region36: #{_vae_forward_impl.1} parent=1 // pred_region
      _
    $region37: #{_vae_forward_impl.1} parent=1 // pred_fallthru
      _
    // Predicated region
    $region38: #{_vae_forward_impl.1} parent=1 // pred_check
      _
    $region39: #{_vae_forward_impl.1} parent=1 // pred_check_branch
      %80 = sbr.rel (0) target = $region41
    $region40: #{_vae_forward_impl.1} parent=1 // pred_region
      _
    $region41: #{_vae_forward_impl.1} parent=1 // pred_fallthru
      _
    // Predicated region
    $region42: #{_vae_forward_impl.1} parent=1 // pred_check
      _
    $region43: #{_vae_forward_impl.1} parent=1 // pred_check_branch
      %82 = sbr.rel (0) target = $region45
    $region44: #{_vae_forward_impl.1} parent=1 // pred_region
      %83 = dma.done [#allocation3], 1024
    $region45: #{_vae_forward_impl.1} parent=1 // pred_fallthru
      _
    // Predicated region
    $region46: #{_vae_forward_impl.1} parent=1 // pred_check
      _
    $region47: #{_vae_forward_impl.1} parent=1 // pred_check_branch
      %85 = sbr.rel (0) target = $region49
    $region48: #{_vae_forward_impl.1} parent=1 // pred_region
      %86 = dma.done [#allocation5], 2048
    $region49: #{_vae_forward_impl.1} parent=1 // pred_fallthru
      _
    // Predicated region
    $region50: #{_vae_forward_impl.1} parent=1 // pred_check
      _
    $region51: #{_vae_forward_impl.1} parent=1 // pred_check_branch
      %88 = sbr.rel (0) target = $region53
    $region52: #{_vae_forward_impl.1} parent=1 // pred_region
      %89 = dma.done [#allocation5], 1024
    $region53: #{_vae_forward_impl.1} parent=1 // pred_fallthru
      _
    // Predicated region
    $region54: #{_vae_forward_impl.1} parent=1 // pred_check
      _
    $region55: #{_vae_forward_impl.1} parent=1 // pred_check_branch
      %91 = sbr.rel (0) target = $region57
    $region56: #{_vae_forward_impl.1} parent=1 // pred_region
      %92 = dma.done [#allocation8], 2048
    $region57: #{_vae_forward_impl.1} parent=1 // pred_fallthru
      _
    %v94 = vld [vmem:[%s0] sm:$0xff]
    %v95 = vpack.c.bf16 %v94, %v94
    %v96 = vld [vmem:[#allocation2] sm:$0xf]
    %v97 = vld [vmem:[#allocation2 + $0x4] sm:$0xf]
    %v98 = vld [vmem:[#allocation2 + $0x8] sm:$0xf]
    %v99 = vld [vmem:[#allocation2 + $0xc] sm:$0xf]
    %v100 = vld [vmem:[#allocation2 + $0x10] sm:$0xf]
    %v101 = vld [vmem:[#allocation2 + $0x14] sm:$0xf]
    %v102 = vld [vmem:[#allocation2 + $0x18] sm:$0xf]
    %v103 = vld [vmem:[#allocation2 + $0x1c] sm:$0xf]
    %v104 = vld [vmem:[#allocation2 + $0x20] sm:$0xf]
    %v105 = vld [vmem:[#allocation2 + $0x24] sm:$0xf]
    %v106 = vld [vmem:[#allocation2 + $0x28] sm:$0xf]
    %v107 = vld [vmem:[#allocation2 + $0x2c] sm:$0xf]
    %v108 = vld [vmem:[#allocation2 + $0x30] sm:$0xf]
    %v109 = vld [vmem:[#allocation2 + $0x34] sm:$0xf]
    %v110 = vld [vmem:[#allocation2 + $0x38] sm:$0xf]
    %v111 = vld [vmem:[#allocation2 + $0x3c] sm:$0xf]
    %v112 = vld [vmem:[%s2] sm:$0x1]
    %v114 = vlaneseq
    %v115 = vshrl.u32 %v114, 7
    %v116 = vsub.s32 0, %v115
    %v117 = vrot.slane %v112, %v116
    %v135 = vunpack.c.l.b16 %v96
    %v136 = vunpack.c.l.b16 %v97
    %v137 = vunpack.c.l.b16 %v98
    %v138 = vunpack.c.l.b16 %v99
    %v139 = vunpack.c.l.b16 %v100
    %v140 = vunpack.c.l.b16 %v101
    %v141 = vunpack.c.l.b16 %v102
    %v142 = vunpack.c.l.b16 %v103
    %v143 = vunpack.c.l.b16 %v104
    %v144 = vunpack.c.l.b16 %v105
    %v145 = vunpack.c.l.b16 %v106
    %v146 = vunpack.c.l.b16 %v107
    %v147 = vunpack.c.l.b16 %v108
    %v148 = vunpack.c.l.b16 %v109
    %v149 = vunpack.c.l.b16 %v110
    %v150 = vunpack.c.l.b16 %v111
    %v151 = vpack.c.b16 %v136, %v135
    %v152 = vpack.c.b16 %v138, %v137
    %v153 = vpack.c.b16 %v140, %v139
    %v154 = vpack.c.b16 %v142, %v141
    %v155 = vpack.c.b16 %v144, %v143
    %v156 = vpack.c.b16 %v146, %v145
    %v157 = vpack.c.b16 %v148, %v147
    %v158 = vpack.c.b16 %v150, %v149
    %167 = vmatprep.subr.bf16.mxu0 0
    %168 = vmatpush1.bf16.msra.mxu0 %v151
    %169 = vmatprep.subr.bf16.mxu0 0
    %170 = vmatpush1.bf16.msra.mxu0 %v152
    %171 = vmatprep.subr.bf16.mxu0 0
    %172 = vmatpush1.bf16.msra.mxu0 %v153
    %173 = vmatprep.subr.bf16.mxu0 0
    %174 = vmatpush1.bf16.msra.mxu0 %v154
    %175 = vmatprep.subr.bf16.mxu0 0
    %176 = vmatpush1.bf16.msra.mxu0 %v155
    %177 = vmatprep.subr.bf16.mxu0 0
    %178 = vmatpush1.bf16.msra.mxu0 %v156
    %179 = vmatprep.subr.bf16.mxu0 0
    %180 = vmatpush1.bf16.msra.mxu0 %v157
    %181 = vmatprep.subr.bf16.mxu0 0
    %182 = vmatpush1.bf16.msra.mxu0 %v158
    %183 = vmatprep.subr.bf16.mxu0 0
    %184 = vmatpush1.bf16.msra.mxu0 0
    %185 = vmatprep.subr.bf16.mxu0 0
    %186 = vmatpush1.bf16.msra.mxu0 0
    %187 = vmatprep.subr.bf16.mxu0 0
    %188 = vmatpush1.bf16.msra.mxu0 0
    %189 = vmatprep.subr.bf16.mxu0 0
    %190 = vmatpush1.bf16.msra.mxu0 0
    %191 = vmatprep.subr.bf16.mxu0 0
    %192 = vmatpush1.bf16.msra.mxu0 0
    %193 = vmatprep.subr.bf16.mxu0 0
    %194 = vmatpush1.bf16.msra.mxu0 0
    %195 = vmatprep.subr.bf16.mxu0 0
    %196 = vmatpush1.bf16.msra.mxu0 0
    %197 = vmatprep.subr.bf16.mxu0 0
    %198 = vmatpush1.bf16.msra.mxu0 0
    %199 = vmatprep.mubr.bf16.mxu0 0
    %200 = vmatmul.mubr.bf16.gmra.mrb[0].mxu0 %v95
    %v201 = vpop.f32.mrb[0].mxu0
    %v202 = vadd.f32 %v117, %v201
    %v203 = vpop.f32.mrb[0].mxu0
    %v204 = vpop.f32.mrb[0].mxu0
    %v205 = vpop.f32.mrb[0].mxu0
    %206 = vdwg.mxu0
    %v207 = vmax.f32 %v202, 0.0
    %v208 = vpack.c.bf16 %v207, %v207
    %v209 = vld [vmem:[#allocation4] sm:$0xff]
    %v210 = vld [vmem:[#allocation4 + $0x8] sm:$0xff]
    %v211 = vld [vmem:[#allocation4 + $0x10] sm:$0xff]
    %v212 = vld [vmem:[#allocation4 + $0x18] sm:$0xff]
    %v213 = vld [vmem:[#allocation4 + $0x20] sm:$0xff]
    %v214 = vld [vmem:[#allocation4 + $0x28] sm:$0xff]
    %v215 = vld [vmem:[#allocation4 + $0x30] sm:$0xff]
    %v216 = vld [vmem:[#allocation4 + $0x38] sm:$0xff]
    %v217 = vld [vmem:[#allocation4 + $0x40] sm:$0xff]
    %v218 = vld [vmem:[#allocation4 + $0x48] sm:$0xff]
    %v219 = vld [vmem:[#allocation4 + $0x50] sm:$0xff]
    %v220 = vld [vmem:[#allocation4 + $0x58] sm:$0xff]
    %v221 = vld [vmem:[#allocation4 + $0x60] sm:$0xff]
    %v222 = vld [vmem:[#allocation4 + $0x68] sm:$0xff]
    %v223 = vld [vmem:[#allocation4 + $0x70] sm:$0xff]
    %v224 = vld [vmem:[#allocation4 + $0x78] sm:$0xff]
    %v225 = vld [vmem:[%s4] sm:$0x3]
    %v227 = vlaneseq
    %v228 = vshrl.u32 %v227, 7
    %v229 = vsub.s32 0, %v228
    %v230 = vrot.slane %v225, %v229
    %v231 = vlaneseq
    %v232 = vshrl.u32 %v231, 7
    %v233 = vsub.s32 1, %v232
    %v234 = vrot.slane %v225, %v233
    %v253 = vunpack.c.l.b16 %v209
    %v254 = vunpack.c.h.b16 %v209
    %v255 = vunpack.c.l.b16 %v210
    %v256 = vunpack.c.h.b16 %v210
    %v257 = vunpack.c.l.b16 %v211
    %v258 = vunpack.c.h.b16 %v211
    %v259 = vunpack.c.l.b16 %v212
    %v260 = vunpack.c.h.b16 %v212
    %v261 = vunpack.c.l.b16 %v213
    %v262 = vunpack.c.h.b16 %v213
    %v263 = vunpack.c.l.b16 %v214
    %v264 = vunpack.c.h.b16 %v214
    %v265 = vunpack.c.l.b16 %v215
    %v266 = vunpack.c.h.b16 %v215
    %v267 = vunpack.c.l.b16 %v216
    %v268 = vunpack.c.h.b16 %v216
    %v269 = vunpack.c.l.b16 %v217
    %v270 = vunpack.c.h.b16 %v217
    %v271 = vunpack.c.l.b16 %v218
    %v272 = vunpack.c.h.b16 %v218
    %v273 = vunpack.c.l.b16 %v219
    %v274 = vunpack.c.h.b16 %v219
    %v275 = vunpack.c.l.b16 %v220
    %v276 = vunpack.c.h.b16 %v220
    %v277 = vunpack.c.l.b16 %v221
    %v278 = vunpack.c.h.b16 %v221
    %v279 = vunpack.c.l.b16 %v222
    %v280 = vunpack.c.h.b16 %v222
    %v281 = vunpack.c.l.b16 %v223
    %v282 = vunpack.c.h.b16 %v223
    %v283 = vunpack.c.l.b16 %v224
    %v284 = vunpack.c.h.b16 %v224
    %v285 = vpack.c.b16 %v255, %v253
    %v286 = vpack.c.b16 %v256, %v254
    %v287 = vpack.c.b16 %v259, %v257
    %v288 = vpack.c.b16 %v260, %v258
    %v289 = vpack.c.b16 %v263, %v261
    %v290 = vpack.c.b16 %v264, %v262
    %v291 = vpack.c.b16 %v267, %v265
    %v292 = vpack.c.b16 %v268, %v266
    %v293 = vpack.c.b16 %v271, %v269
    %v294 = vpack.c.b16 %v272, %v270
    %v295 = vpack.c.b16 %v275, %v273
    %v296 = vpack.c.b16 %v276, %v274
    %v297 = vpack.c.b16 %v279, %v277
    %v298 = vpack.c.b16 %v280, %v278
    %v299 = vpack.c.b16 %v283, %v281
    %v300 = vpack.c.b16 %v284, %v282
    %317 = vmatprep.subr.bf16.mxu0 %v286
    %318 = vmatpush1.bf16.msra.mxu0 %v285
    %319 = vmatprep.subr.bf16.mxu0 %v288
    %320 = vmatpush1.bf16.msra.mxu0 %v287
    %321 = vmatprep.subr.bf16.mxu0 %v290
    %322 = vmatpush1.bf16.msra.mxu0 %v289
    %323 = vmatprep.subr.bf16.mxu0 %v292
    %324 = vmatpush1.bf16.msra.mxu0 %v291
    %325 = vmatprep.subr.bf16.mxu0 %v294
    %326 = vmatpush1.bf16.msra.mxu0 %v293
    %327 = vmatprep.subr.bf16.mxu0 %v296
    %328 = vmatpush1.bf16.msra.mxu0 %v295
    %329 = vmatprep.subr.bf16.mxu0 %v298
    %330 = vmatpush1.bf16.msra.mxu0 %v297
    %331 = vmatprep.subr.bf16.mxu0 %v300
    %332 = vmatpush1.bf16.msra.mxu0 %v299
    %333 = vmatprep.subr.bf16.mxu0 0
    %334 = vmatpush1.bf16.msra.mxu0 0
    %335 = vmatprep.subr.bf16.mxu0 0
    %336 = vmatpush1.bf16.msra.mxu0 0
    %337 = vmatprep.subr.bf16.mxu0 0
    %338 = vmatpush1.bf16.msra.mxu0 0
    %339 = vmatprep.subr.bf16.mxu0 0
    %340 = vmatpush1.bf16.msra.mxu0 0
    %341 = vmatprep.subr.bf16.mxu0 0
    %342 = vmatpush1.bf16.msra.mxu0 0
    %343 = vmatprep.subr.bf16.mxu0 0
    %344 = vmatpush1.bf16.msra.mxu0 0
    %345 = vmatprep.subr.bf16.mxu0 0
    %346 = vmatpush1.bf16.msra.mxu0 0
    %347 = vmatprep.subr.bf16.mxu0 0
    %348 = vmatpush1.bf16.msra.mxu0 0
    %349 = vmatprep.mubr.bf16.mxu0 0
    %350 = vmatmul.mubr.bf16.gmra.mrb[0].mxu0 %v208
    %v351 = vpop.f32.mrb[0].mxu0
    %v352 = vadd.f32 %v230, %v351
    %v353 = vpop.f32.mrb[0].mxu0
    %v354 = vadd.f32 %v234, %v353
    %v355 = vpop.f32.mrb[0].mxu0
    %v356 = vpop.f32.mrb[0].mxu0
    %357 = vdwg.mxu0
    %358 = vst [vmem:[%s10] sm:$0xff] %v352
    %359 = vst [vmem:[%s11] sm:$0xff] %v354
    %v360 = vmul.f32 %v354, 0.5
    %v361 = vmul.f32 %v360, 1.442695
    %v362 = vpow.pop %v361
    %v363 = vld [vmem:[%s9] sm:$0xff]
    %v364 = vmul.f32 %v362, %v363
    %v365 = vadd.f32 %v352, %v364
    %v366 = vpack.c.bf16 %v365, %v365
    %v367 = vld [vmem:[#allocation6] sm:$0xf]
    %v368 = vld [vmem:[#allocation6 + $0x4] sm:$0xf]
    %v369 = vld [vmem:[#allocation6 + $0x8] sm:$0xf]
    %v370 = vld [vmem:[#allocation6 + $0xc] sm:$0xf]
    %v371 = vld [vmem:[#allocation6 + $0x10] sm:$0xf]
    %v372 = vld [vmem:[#allocation6 + $0x14] sm:$0xf]
    %v373 = vld [vmem:[#allocation6 + $0x18] sm:$0xf]
    %v374 = vld [vmem:[#allocation6 + $0x1c] sm:$0xf]
    %v375 = vld [vmem:[#allocation6 + $0x20] sm:$0xf]
    %v376 = vld [vmem:[#allocation6 + $0x24] sm:$0xf]
    %v377 = vld [vmem:[#allocation6 + $0x28] sm:$0xf]
    %v378 = vld [vmem:[#allocation6 + $0x2c] sm:$0xf]
    %v379 = vld [vmem:[#allocation6 + $0x30] sm:$0xf]
    %v380 = vld [vmem:[#allocation6 + $0x34] sm:$0xf]
    %v381 = vld [vmem:[#allocation6 + $0x38] sm:$0xf]
    %v382 = vld [vmem:[#allocation6 + $0x3c] sm:$0xf]
    %v383 = vld [vmem:[%s6] sm:$0x1]
    %v385 = vlaneseq
    %v386 = vshrl.u32 %v385, 7
    %v387 = vsub.s32 0, %v386
    %v388 = vrot.slane %v383, %v387
    %v406 = vunpack.c.l.b16 %v367
    %v407 = vunpack.c.l.b16 %v368
    %v408 = vunpack.c.l.b16 %v369
    %v409 = vunpack.c.l.b16 %v370
    %v410 = vunpack.c.l.b16 %v371
    %v411 = vunpack.c.l.b16 %v372
    %v412 = vunpack.c.l.b16 %v373
    %v413 = vunpack.c.l.b16 %v374
    %v414 = vunpack.c.l.b16 %v375
    %v415 = vunpack.c.l.b16 %v376
    %v416 = vunpack.c.l.b16 %v377
    %v417 = vunpack.c.l.b16 %v378
    %v418 = vunpack.c.l.b16 %v379
    %v419 = vunpack.c.l.b16 %v380
    %v420 = vunpack.c.l.b16 %v381
    %v421 = vunpack.c.l.b16 %v382
    %v422 = vpack.c.b16 %v407, %v406
    %v423 = vpack.c.b16 %v409, %v408
    %v424 = vpack.c.b16 %v411, %v410
    %v425 = vpack.c.b16 %v413, %v412
    %v426 = vpack.c.b16 %v415, %v414
    %v427 = vpack.c.b16 %v417, %v416
    %v428 = vpack.c.b16 %v419, %v418
    %v429 = vpack.c.b16 %v421, %v420
    %438 = vmatprep.subr.bf16.mxu0 0
    %439 = vmatpush1.bf16.msra.mxu0 %v422
    %440 = vmatprep.subr.bf16.mxu0 0
    %441 = vmatpush1.bf16.msra.mxu0 %v423
    %442 = vmatprep.subr.bf16.mxu0 0
    %443 = vmatpush1.bf16.msra.mxu0 %v424
    %444 = vmatprep.subr.bf16.mxu0 0
    %445 = vmatpush1.bf16.msra.mxu0 %v425
    %446 = vmatprep.subr.bf16.mxu0 0
    %447 = vmatpush1.bf16.msra.mxu0 %v426
    %448 = vmatprep.subr.bf16.mxu0 0
    %449 = vmatpush1.bf16.msra.mxu0 %v427
    %450 = vmatprep.subr.bf16.mxu0 0
    %451 = vmatpush1.bf16.msra.mxu0 %v428
    %452 = vmatprep.subr.bf16.mxu0 0
    %453 = vmatpush1.bf16.msra.mxu0 %v429
    %454 = vmatprep.subr.bf16.mxu0 0
    %455 = vmatpush1.bf16.msra.mxu0 0
    %456 = vmatprep.subr.bf16.mxu0 0
    %457 = vmatpush1.bf16.msra.mxu0 0
    %458 = vmatprep.subr.bf16.mxu0 0
    %459 = vmatpush1.bf16.msra.mxu0 0
    %460 = vmatprep.subr.bf16.mxu0 0
    %461 = vmatpush1.bf16.msra.mxu0 0
    %462 = vmatprep.subr.bf16.mxu0 0
    %463 = vmatpush1.bf16.msra.mxu0 0
    %464 = vmatprep.subr.bf16.mxu0 0
    %465 = vmatpush1.bf16.msra.mxu0 0
    %466 = vmatprep.subr.bf16.mxu0 0
    %467 = vmatpush1.bf16.msra.mxu0 0
    %468 = vmatprep.subr.bf16.mxu0 0
    %469 = vmatpush1.bf16.msra.mxu0 0
    %470 = vmatprep.mubr.bf16.mxu0 0
    %471 = vmatmul.mubr.bf16.gmra.mrb[0].mxu0 %v366
    %v472 = vpop.f32.mrb[0].mxu0
    %v473 = vadd.f32 %v388, %v472
    %v474 = vpop.f32.mrb[0].mxu0
    %v475 = vpop.f32.mrb[0].mxu0
    %v476 = vpop.f32.mrb[0].mxu0
    %477 = vdwg.mxu0
    %v478 = vmax.f32 %v473, 0.0
    %v479 = vpack.c.bf16 %v478, %v478
    %v480 = vld [vmem:[#allocation7] sm:$0xff]
    %v481 = vld [vmem:[#allocation7 + $0x8] sm:$0xff]
    %v482 = vld [vmem:[#allocation7 + $0x10] sm:$0xff]
    %v483 = vld [vmem:[#allocation7 + $0x18] sm:$0xff]
    %v484 = vld [vmem:[#allocation7 + $0x20] sm:$0xff]
    %v485 = vld [vmem:[#allocation7 + $0x28] sm:$0xff]
    %v486 = vld [vmem:[#allocation7 + $0x30] sm:$0xff]
    %v487 = vld [vmem:[#allocation7 + $0x38] sm:$0xff]
    %v488 = vld [vmem:[#allocation7 + $0x40] sm:$0xff]
    %v489 = vld [vmem:[#allocation7 + $0x48] sm:$0xff]
    %v490 = vld [vmem:[#allocation7 + $0x50] sm:$0xff]
    %v491 = vld [vmem:[#allocation7 + $0x58] sm:$0xff]
    %v492 = vld [vmem:[#allocation7 + $0x60] sm:$0xff]
    %v493 = vld [vmem:[#allocation7 + $0x68] sm:$0xff]
    %v494 = vld [vmem:[#allocation7 + $0x70] sm:$0xff]
    %v495 = vld [vmem:[#allocation7 + $0x78] sm:$0xff]
    %v496 = vld [vmem:[%s8] sm:$0x3]
    %v498 = vlaneseq
    %v499 = vshrl.u32 %v498, 7
    %v500 = vsub.s32 0, %v499
    %v501 = vrot.slane %v496, %v500
    %v502 = vlaneseq
    %v503 = vshrl.u32 %v502, 7
    %v504 = vsub.s32 1, %v503
    %v505 = vrot.slane %v496, %v504
    %v524 = vunpack.c.l.b16 %v480
    %v525 = vunpack.c.h.b16 %v480
    %v526 = vunpack.c.l.b16 %v481
    %v527 = vunpack.c.h.b16 %v481
    %v528 = vunpack.c.l.b16 %v482
    %v529 = vunpack.c.h.b16 %v482
    %v530 = vunpack.c.l.b16 %v483
    %v531 = vunpack.c.h.b16 %v483
    %v532 = vunpack.c.l.b16 %v484
    %v533 = vunpack.c.h.b16 %v484
    %v534 = vunpack.c.l.b16 %v485
    %v535 = vunpack.c.h.b16 %v485
    %v536 = vunpack.c.l.b16 %v486
    %v537 = vunpack.c.h.b16 %v486
    %v538 = vunpack.c.l.b16 %v487
    %v539 = vunpack.c.h.b16 %v487
    %v540 = vunpack.c.l.b16 %v488
    %v541 = vunpack.c.h.b16 %v488
    %v542 = vunpack.c.l.b16 %v489
    %v543 = vunpack.c.h.b16 %v489
    %v544 = vunpack.c.l.b16 %v490
    %v545 = vunpack.c.h.b16 %v490
    %v546 = vunpack.c.l.b16 %v491
    %v547 = vunpack.c.h.b16 %v491
    %v548 = vunpack.c.l.b16 %v492
    %v549 = vunpack.c.h.b16 %v492
    %v550 = vunpack.c.l.b16 %v493
    %v551 = vunpack.c.h.b16 %v493
    %v552 = vunpack.c.l.b16 %v494
    %v553 = vunpack.c.h.b16 %v494
    %v554 = vunpack.c.l.b16 %v495
    %v555 = vunpack.c.h.b16 %v495
    %v556 = vpack.c.b16 %v526, %v524
    %v557 = vpack.c.b16 %v527, %v525
    %v558 = vpack.c.b16 %v530, %v528
    %v559 = vpack.c.b16 %v531, %v529
    %v560 = vpack.c.b16 %v534, %v532
    %v561 = vpack.c.b16 %v535, %v533
    %v562 = vpack.c.b16 %v538, %v536
    %v563 = vpack.c.b16 %v539, %v537
    %v564 = vpack.c.b16 %v542, %v540
    %v565 = vpack.c.b16 %v543, %v541
    %v566 = vpack.c.b16 %v546, %v544
    %v567 = vpack.c.b16 %v547, %v545
    %v568 = vpack.c.b16 %v550, %v548
    %v569 = vpack.c.b16 %v551, %v549
    %v570 = vpack.c.b16 %v554, %v552
    %v571 = vpack.c.b16 %v555, %v553
    %588 = vmatprep.subr.bf16.mxu0 %v557
    %589 = vmatpush1.bf16.msra.mxu0 %v556
    %590 = vmatprep.subr.bf16.mxu0 %v559
    %591 = vmatpush1.bf16.msra.mxu0 %v558
    %592 = vmatprep.subr.bf16.mxu0 %v561
    %593 = vmatpush1.bf16.msra.mxu0 %v560
    %594 = vmatprep.subr.bf16.mxu0 %v563
    %595 = vmatpush1.bf16.msra.mxu0 %v562
    %596 = vmatprep.subr.bf16.mxu0 %v565
    %597 = vmatpush1.bf16.msra.mxu0 %v564
    %598 = vmatprep.subr.bf16.mxu0 %v567
    %599 = vmatpush1.bf16.msra.mxu0 %v566
    %600 = vmatprep.subr.bf16.mxu0 %v569
    %601 = vmatpush1.bf16.msra.mxu0 %v568
    %602 = vmatprep.subr.bf16.mxu0 %v571
    %603 = vmatpush1.bf16.msra.mxu0 %v570
    %604 = vmatprep.subr.bf16.mxu0 0
    %605 = vmatpush1.bf16.msra.mxu0 0
    %606 = vmatprep.subr.bf16.mxu0 0
    %607 = vmatpush1.bf16.msra.mxu0 0
    %608 = vmatprep.subr.bf16.mxu0 0
    %609 = vmatpush1.bf16.msra.mxu0 0
    %610 = vmatprep.subr.bf16.mxu0 0
    %611 = vmatpush1.bf16.msra.mxu0 0
    %612 = vmatprep.subr.bf16.mxu0 0
    %613 = vmatpush1.bf16.msra.mxu0 0
    %614 = vmatprep.subr.bf16.mxu0 0
    %615 = vmatpush1.bf16.msra.mxu0 0
    %616 = vmatprep.subr.bf16.mxu0 0
    %617 = vmatpush1.bf16.msra.mxu0 0
    %618 = vmatprep.subr.bf16.mxu0 0
    %619 = vmatpush1.bf16.msra.mxu0 0
    %620 = vmatprep.mubr.bf16.mxu0 0
    %621 = vmatmul.mubr.bf16.gmra.mrb[0].mxu0 %v479
    %v622 = vpop.f32.mrb[0].mxu0
    %v623 = vadd.f32 %v501, %v622
    %v624 = vpop.f32.mrb[0].mxu0
    %v625 = vadd.f32 %v505, %v624
    %v626 = vpop.f32.mrb[0].mxu0
    %v627 = vpop.f32.mrb[0].mxu0
    %628 = vdwg.mxu0
    %629 = vst [vmem:[%s12] sm:$0xff] %v623
    %630 = vst [vmem:[%s12 + $0x8] sm:$0xff] %v625
    // Predicated region
    $region58: #{_vae_forward_impl.1} parent=1 // pred_check
      _
    $region59: #{_vae_forward_impl.1} parent=1 // pred_check_branch
      %632 = sbr.rel (0) target = $region61
    $region60: #{_vae_forward_impl.1} parent=1 // pred_region
      _
    $region61: #{_vae_forward_impl.1} parent=1 // pred_fallthru
      _
    // Predicated region
    $region62: #{_vae_forward_impl.1} parent=1 // pred_check
      _
    $region63: #{_vae_forward_impl.1} parent=1 // pred_check_branch
      %634 = sbr.rel (0) target = $region65
    $region64: #{_vae_forward_impl.1} parent=1 // pred_region
      _
    $region65: #{_vae_forward_impl.1} parent=1 // pred_fallthru
      _
    // Predicated region
    $region66: #{_vae_forward_impl.1} parent=1 // pred_check
      _
    $region67: #{_vae_forward_impl.1} parent=1 // pred_check_branch
      %636 = sbr.rel (0) target = $region69
    $region68: #{_vae_forward_impl.1} parent=1 // pred_region
      _
    $region69: #{_vae_forward_impl.1} parent=1 // pred_fallthru
      _
    // Predicated region
    $region70: #{_vae_forward_impl.1} parent=1 // pred_check
      _
    $region71: #{_vae_forward_impl.1} parent=1 // pred_check_branch
      %638 = sbr.rel (0) target = $region73
    $region72: #{_vae_forward_impl.1} parent=1 // pred_region
      _
    $region73: #{_vae_forward_impl.1} parent=1 // pred_fallthru
      _
    // Predicated region
    $region74: #{_vae_forward_impl.1} parent=1 // pred_check
      _
    $region75: #{_vae_forward_impl.1} parent=1 // pred_check_branch
      %640 = sbr.rel (0) target = $region77
    $region76: #{_vae_forward_impl.1} parent=1 // pred_region
      _
    $region77: #{_vae_forward_impl.1} parent=1 // pred_fallthru
      _
    // Predicated region
    $region78: #{_vae_forward_impl.1} parent=1 // pred_check
      _
    $region79: #{_vae_forward_impl.1} parent=1 // pred_check_branch
      %642 = sbr.rel (0) target = $region81
    $region80: #{_vae_forward_impl.1} parent=1 // pred_region
      _
    $region81: #{_vae_forward_impl.1} parent=1 // pred_fallthru
      _
    %643 = vsyncpa [#allocation3], 1
    %644 = vsyncpa [#allocation5], 1
    %645 = vsyncpa [#allocation8], 1

</llo_original>
